<compile_context>
chip_gen: v5e
topology: v5e:2x2
jax: 0.10.0
libtpu: 0.0.40
codegen_flags: <defaults>
</compile_context>

<pallas_src>
import functools

import jax
import jax.numpy as jnp
from jax import lax
from jax.experimental import pallas as pl
from jax.experimental.pallas import tpu as pltpu


def _phase_convt_kernel(x_ref, w_ref, b_ref, o_ref, *, tap_offsets, l_out):
    # x_ref: (1, Cin, Hpad*Wpad)  halo-padded input image, spatial flattened on lanes
    # w_ref: (1, T, Cout, Cin)    this phase's tap weights (zero where tap invalid)
    # b_ref: (Cout, 1)            bias
    # o_ref: (1, 1, Cout, Lout)   this phase's output slab (lane-dense last dim)
    cout = o_ref.shape[2]

    x = x_ref[0]                                   # (Cin, Hpad*Wpad)

    acc = jnp.zeros((cout, l_out), jnp.float32)
    # T is small and static -> unrolled; each tap is a lane-shifted view of the
    # same canvas feeding a (Cout, Cin) x (Cin, Lout) matmul, accumulated in f32.
    for t, off in enumerate(tap_offsets):
        xt = x[:, off:off + l_out]                 # (Cin, Lout) static lane-offset slice
        wt = w_ref[0, t]                           # (Cout, Cin)
        acc = acc + lax.dot_general(
            wt, xt,
            dimension_numbers=(((1,), (0,)), ((), ())),
            preferred_element_type=jnp.float32)

    o_ref[0, 0] = (acc + b_ref[...]).astype(o_ref.dtype)


def upsample_conv_pallas(x, weight_t, bias, *, stride, padding):
    """ConvTranspose2d forward.

    x:        (N, Cin, H, W)      float32 (NCHW, PyTorch layout)
    weight_t: (Cin, Cout, K, K)   PyTorch ConvTranspose2d weight layout
    bias:     (Cout,)
    """
    N, Cin, H, W = x.shape
    Cin_w, Cout, K, K2 = weight_t.shape
    assert Cin_w == Cin and K == K2
    s, p = int(stride), int(padding)

    Ho = (H - 1) * s - 2 * p + K
    Wo = (W - 1) * s - 2 * p + K
    assert Ho > 0 and Wo > 0, "invalid ConvTranspose2d configuration"

    # ---- sub-pixel phase decomposition bookkeeping (all static Python ints) ----
    # y[n, co, s*q + r, ...] = sum over {k : k == (r+p) mod s} of
    #     x[n, ci, q + e, ...] * Wt[ci, co, k, ...],   e = (r + p - k) // s
    e_vals = sorted({(r + p - k) // s
                     for r in range(s) for k in range(K) if (r + p - k) % s == 0})
    e_min, e_max = e_vals[0], e_vals[-1]
    D = e_max - e_min + 1                 # shifted-window taps per spatial dim
    T = D * D

    Qh = -(-Ho // s)                      # ceil(Ho / s): rows computed per phase
    Qw = -(-Wo // s)
    hl = max(0, -e_min)                   # low-side halo
    Hpad = max(hl + Qh + e_max + 1, hl + H)
    Wpad = max(hl + Qw + e_max + 1, hl + W)
    Lout = Qh * Wpad                      # lane-dense output width per phase

    # Halo-padded canvas (tiny pad, ~1.1-1.3x of x; NOT stride^2 dilation).
    canvas = jnp.pad(x, ((0, 0), (0, 0),
                         (hl, Hpad - hl - H),
                         (hl, Wpad - hl - W)))
    canvas = canvas.reshape(N, Cin, Hpad * Wpad)

    # Static lane offset of each tap's shifted window inside the flat canvas.
    tap_offsets = tuple((hl + e_min + ih) * Wpad + (hl + e_min + iw)
                        for ih in range(D) for iw in range(D))

    # Per-phase tap weights: w_big[phase, tap, co, ci]; zero where that tap has no
    # corresponding kernel element for the phase.
    w_big = jnp.zeros((s * s, T, Cout, Cin), weight_t.dtype)
    for rh in range(s):
        for rw in range(s):
            for ih in range(D):
                for iw in range(D):
                    kh = rh + p - s * (e_min + ih)
                    kw = rw + p - s * (e_min + iw)
                    if 0 <= kh < K and 0 <= kw < K:
                        w_big = w_big.at[rh * s + rw, ih * D + iw].set(
                            weight_t[:, :, kh, kw].T)          # (Cout, Cin)
    b2d = bias.reshape(Cout, 1)

    kernel = functools.partial(_phase_convt_kernel,
                               tap_offsets=tap_offsets, l_out=Lout)

    # ---- Pallas call: grid over (batch, phase), both parallel ----
    out = pl.pallas_call(
        kernel,
        out_shape=jax.ShapeDtypeStruct((N, s * s, Cout, Lout), x.dtype),
        grid=(N, s * s),
        in_specs=[
            # canvas block index ignores the phase axis -> stays resident in VMEM
            pl.BlockSpec((1, Cin, Hpad * Wpad), lambda n, ph: (n, 0, 0)),
            pl.BlockSpec((1, T, Cout, Cin), lambda n, ph: (ph, 0, 0, 0)),
            pl.BlockSpec((Cout, 1), lambda n, ph: (0, 0)),
        ],
        out_specs=pl.BlockSpec((1, 1, Cout, Lout), lambda n, ph: (n, ph, 0, 0)),
        compiler_params=pltpu.CompilerParams(
            dimension_semantics=("parallel", "parallel")),
    )(canvas, w_big, b2d)

    # ---- de-interleave phases back into NCHW (cheap wrapper glue) ----
    out = out.reshape(N, s, s, Cout, Qh, Wpad)[:, :, :, :, :, :Qw]   # (N,rh,rw,C,qh,qw)
    out = jnp.transpose(out, (0, 3, 4, 1, 5, 2))                     # (N,C,qh,rh,qw,rw)
    out = out.reshape(N, Cout, Qh * s, Qw * s)[:, :, :Ho, :Wo]
    return out


def _reference_conv_transpose(x_nchw, weight_t, bias, *, stride, padding):
    """Pure-JAX reference for ConvTranspose2d (NCHW); valid for padding <= K-1."""
    Cin, Cout, K, _ = weight_t.shape
    w_conv = jnp.transpose(weight_t[:, :, ::-1, ::-1], (1, 0, 2, 3))   # OIHW
    pp = K - 1 - padding
    y = lax.conv_general_dilated(
        x_nchw, w_conv,
        window_strides=(1, 1),
        padding=[(pp, pp), (pp, pp)],
        lhs_dilation=(stride, stride),
        dimension_numbers=("NCHW", "OIHW", "NCHW"))
    return y + bias[None, :, None, None]


if __name__ == "__main__":
    # Module config: upsampleConv(in_channels=4, out_channels=8,
    #                             kernel_size=3, stride=2, padding=1)
    N, Cin, H, W = 2, 4, 16, 16
    Cout, K, stride, padding = 8, 3, 2, 1

    key = jax.random.PRNGKey(0)
    kx, kw, kb = jax.random.split(key, 3)

    x = jax.random.normal(kx, (N, Cin, H, W), dtype=jnp.float32)

    # PyTorch-style uniform(-bound, bound) init, bound = 1/sqrt(Cin * K * K).
    bound = 1.0 / (Cin * K * K) ** 0.5
    weight_t = jax.random.uniform(kw, (Cin, Cout, K, K), jnp.float32, -bound, bound)
    bias = jax.random.uniform(kb, (Cout,), jnp.float32, -bound, bound)

    fwd = jax.jit(functools.partial(upsample_conv_pallas,
                                    stride=stride, padding=padding))
    out = fwd(x, weight_t, bias)
    out = jax.block_until_ready(out)

    ref = _reference_conv_transpose(x, weight_t, bias, stride=stride, padding=padding)
    Ho = (H - 1) * stride - 2 * padding + K
    Wo = (W - 1) * stride - 2 * padding + K
    assert out.shape == (N, Cout, Ho, Wo), out.shape
    assert jnp.allclose(out, ref, atol=1e-4, rtol=1e-4), float(jnp.max(jnp.abs(out - ref)))

    print("KERNEL_OK")
</pallas_src>

<mosaic_0001>
module attributes {stable_mosaic.version = 11 : i64} {
  func.func @_phase_convt_kernel(%arg0: i32, %arg1: i32, %arg2: memref<1x4x324xf32, #tpu.memory_space<vmem>>, %arg3: memref<1x4x8x4xf32, #tpu.memory_space<vmem>>, %arg4: memref<8x1xf32, #tpu.memory_space<vmem>>, %arg5: memref<1x1x8x288xf32, #tpu.memory_space<vmem>>) attributes {dimension_semantics = [#tpu.dimension_semantics<parallel>, #tpu.dimension_semantics<parallel>], iteration_bounds = array<i64: 2, 4>, scalar_prefetch = 0 : i64, scratch_operands = 0 : i64, tpu.core_type = #tpu.core_type<tc>, window_params = [{transform_indices = @transform_0, window_bounds = array<i64: 1, 4, 324>}, {transform_indices = @transform_1, window_bounds = array<i64: 1, 4, 8, 4>}, {pipeline_mode = #tpu.pipeline_mode<synchronous>, transform_indices = @transform_2, window_bounds = array<i64: 8, 1>}, {transform_indices = @transform_3, window_bounds = array<i64: 1, 1, 8, 288>}]} {
    %c0 = arith.constant 0 : index
    %c0_0 = arith.constant 0 : index
    %c0_1 = arith.constant 0 : index
    %0 = vector.load %arg2[%c0, %c0_0, %c0_1] : memref<1x4x324xf32, #tpu.memory_space<vmem>>, vector<1x4x324xf32>
    %1 = vector.shape_cast %0 : vector<1x4x324xf32> to vector<4x324xf32>
    %cst = arith.constant 0.000000e+00 : f32
    %2 = vector.broadcast %cst : f32 to vector<8x288xf32>
    %3 = vector.extract_strided_slice %1 {offsets = [0, 0], sizes = [4, 288], strides = [1, 1]} : vector<4x324xf32> to vector<4x288xf32>
    %c0_2 = arith.constant 0 : index
    %c0_3 = arith.constant 0 : index
    %c0_4 = arith.constant 0 : index
    %c0_5 = arith.constant 0 : index
    %4 = vector.load %arg3[%c0_2, %c0_3, %c0_4, %c0_5] : memref<1x4x8x4xf32, #tpu.memory_space<vmem>>, vector<1x1x8x4xf32>
    %5 = vector.shape_cast %4 : vector<1x1x8x4xf32> to vector<8x4xf32>
    %cst_6 = arith.constant dense<0.000000e+00> : vector<8x288xf32>
    %6 = tpu.matmul %5, %3, %cst_6 {dimension_numbers = #tpu.dot_dimension_numbers<[1], [0], [0], [1], [0, 0, 1, 1], [], []>} : vector<8x4xf32>, vector<4x288xf32>, vector<8x288xf32> -> vector<8x288xf32>
    %7 = arith.addf %2, %6 : vector<8x288xf32>
    %8 = vector.extract_strided_slice %1 {offsets = [0, 1], sizes = [4, 288], strides = [1, 1]} : vector<4x324xf32> to vector<4x288xf32>
    %c0_7 = arith.constant 0 : index
    %c1 = arith.constant 1 : index
    %c0_8 = arith.constant 0 : index
    %c0_9 = arith.constant 0 : index
    %9 = vector.load %arg3[%c0_7, %c1, %c0_8, %c0_9] : memref<1x4x8x4xf32, #tpu.memory_space<vmem>>, vector<1x1x8x4xf32>
    %10 = vector.shape_cast %9 : vector<1x1x8x4xf32> to vector<8x4xf32>
    %cst_10 = arith.constant dense<0.000000e+00> : vector<8x288xf32>
    %11 = tpu.matmul %10, %8, %cst_10 {dimension_numbers = #tpu.dot_dimension_numbers<[1], [0], [0], [1], [0, 0, 1, 1], [], []>} : vector<8x4xf32>, vector<4x288xf32>, vector<8x288xf32> -> vector<8x288xf32>
    %12 = arith.addf %7, %11 : vector<8x288xf32>
    %13 = vector.extract_strided_slice %1 {offsets = [0, 18], sizes = [4, 288], strides = [1, 1]} : vector<4x324xf32> to vector<4x288xf32>
    %c0_11 = arith.constant 0 : index
    %c2 = arith.constant 2 : index
    %c0_12 = arith.constant 0 : index
    %c0_13 = arith.constant 0 : index
    %14 = vector.load %arg3[%c0_11, %c2, %c0_12, %c0_13] : memref<1x4x8x4xf32, #tpu.memory_space<vmem>>, vector<1x1x8x4xf32>
    %15 = vector.shape_cast %14 : vector<1x1x8x4xf32> to vector<8x4xf32>
    %cst_14 = arith.constant dense<0.000000e+00> : vector<8x288xf32>
    %16 = tpu.matmul %15, %13, %cst_14 {dimension_numbers = #tpu.dot_dimension_numbers<[1], [0], [0], [1], [0, 0, 1, 1], [], []>} : vector<8x4xf32>, vector<4x288xf32>, vector<8x288xf32> -> vector<8x288xf32>
    %17 = arith.addf %12, %16 : vector<8x288xf32>
    %18 = vector.extract_strided_slice %1 {offsets = [0, 19], sizes = [4, 288], strides = [1, 1]} : vector<4x324xf32> to vector<4x288xf32>
    %c0_15 = arith.constant 0 : index
    %c3 = arith.constant 3 : index
    %c0_16 = arith.constant 0 : index
    %c0_17 = arith.constant 0 : index
    %19 = vector.load %arg3[%c0_15, %c3, %c0_16, %c0_17] : memref<1x4x8x4xf32, #tpu.memory_space<vmem>>, vector<1x1x8x4xf32>
    %20 = vector.shape_cast %19 : vector<1x1x8x4xf32> to vector<8x4xf32>
    %cst_18 = arith.constant dense<0.000000e+00> : vector<8x288xf32>
    %21 = tpu.matmul %20, %18, %cst_18 {dimension_numbers = #tpu.dot_dimension_numbers<[1], [0], [0], [1], [0, 0, 1, 1], [], []>} : vector<8x4xf32>, vector<4x288xf32>, vector<8x288xf32> -> vector<8x288xf32>
    %22 = arith.addf %17, %21 : vector<8x288xf32>
    %c0_19 = arith.constant 0 : index
    %c0_20 = arith.constant 0 : index
    %23 = vector.load %arg4[%c0_19, %c0_20] : memref<8x1xf32, #tpu.memory_space<vmem>>, vector<8x1xf32>
    %24 = vector.broadcast %23 : vector<8x1xf32> to vector<8x288xf32>
    %25 = arith.addf %22, %24 : vector<8x288xf32>
    %c0_21 = arith.constant 0 : index
    %c0_22 = arith.constant 0 : index
    %c0_23 = arith.constant 0 : index
    %c0_24 = arith.constant 0 : index
    %26 = vector.load %arg5[%c0_21, %c0_22, %c0_23, %c0_24] : memref<1x1x8x288xf32, #tpu.memory_space<vmem>>, vector<1x1x8x288xf32>
    %27 = vector.shape_cast %26 : vector<1x1x8x288xf32> to vector<8x288xf32>
    %28 = vector.shape_cast %25 : vector<8x288xf32> to vector<1x1x8x288xf32>
    tpu.vector_store %arg5[%c0_21, %c0_22, %c0_23, %c0_24], %28 {strides = array<i32>} : memref<1x1x8x288xf32, #tpu.memory_space<vmem>>, vector<1x1x8x288xf32>,
    return
  }
  func.func @transform_0(%arg0: i32, %arg1: i32) -> (i32, i32, i32) {
    %c0_i32 = arith.constant 0 : i32
    %c0_i32_0 = arith.constant 0 : i32
    %c0_i32_1 = arith.constant 0 : i32
    return %arg0, %c0_i32, %c0_i32_0 : i32, i32, i32
  }
  func.func @transform_1(%arg0: i32, %arg1: i32) -> (i32, i32, i32, i32) {
    %c0_i32 = arith.constant 0 : i32
    %c0_i32_0 = arith.constant 0 : i32
    %c0_i32_1 = arith.constant 0 : i32
    %c0_i32_2 = arith.constant 0 : i32
    return %arg1, %c0_i32, %c0_i32_0, %c0_i32_1 : i32, i32, i32, i32
  }
  func.func @transform_2(%arg0: i32, %arg1: i32) -> (i32, i32) {
    %c0_i32 = arith.constant 0 : i32
    %c0_i32_0 = arith.constant 0 : i32
    %c0_i32_1 = arith.constant 0 : i32
    return %c0_i32, %c0_i32_0 : i32, i32
  }
  func.func @transform_3(%arg0: i32, %arg1: i32) -> (i32, i32, i32, i32) {
    %c0_i32 = arith.constant 0 : i32
    %c0_i32_0 = arith.constant 0 : i32
    %c0_i32_1 = arith.constant 0 : i32
    return %arg0, %arg1, %c0_i32, %c0_i32_0 : i32, i32, i32, i32
  }
}

</mosaic_0001>

<llo_original>
// kernel: upsample_conv_pallas.1
$region0: #{upsample_conv_pallas.1}
  #allocation0 [shape = 'u32[]', space=smem, size = 0x4, offset = 0x4, fixed_abs, tag = 'smem constant byte address 0x4 - core index']
  #allocation1 [shape = 'u32[72,128]{1,0:T(1,128)}', space=vmem, size = 0x9000, scoped, tag = 'internal scratch']
  %s0 = inlined_call_operand.vmem [shape: f32[2,4,324], index: 0, kind: input, shape index: {}]
  %s1 = inlined_call_operand.vmem [shape: f32[4,4,8,4], index: 1, kind: input, shape index: {}]
  %s2 = inlined_call_operand.vmem [shape: f32[8,1], index: 2, kind: input, shape index: {}]
  %s3 = inlined_call_operand.vmem [shape: f32[2,4,8,288], index: 3, kind: output, shape index: {}]
  %s4 = sld [smem:[#allocation0]]
  $region45: #{upsample_conv_pallas.1} parent=0
    _
  %s6 = ssub.s32 1, %s4
  %s7 = scalar_select 0, %s6, %s4
  loop: start=0, step=1, limit=10
  $region2: #{upsample_conv_pallas.1} parent=0 // loop_pre_header
    _
  $region3: #{upsample_conv_pallas.1} parent=0 // loop_header
    %s9 = sphi 0, %s13
    %p10 = scmp.ge.s32.totalorder %s9, 10
    %s16 = sphi 0, %s28
    %s17 = sphi 0, %s24
    %s18 = sphi 0, %s16
    %s19 = sphi 0, %s17
    %s20 = sphi 0, %s18
    %s21 = sphi 0, %s19
    %s31 = sphi 0, %s33
    %s34 = sphi 0, %s31
    %s35 = sphi 0, %s34
    %s51 = sphi 0, %s35
    %s57 = sphi 0, %s59
    %s60 = sphi 0, %s57
    %s61 = sphi 0, %s60
    %s77 = sphi 0, %s61
    %s81 = sphi 0, %s81
    %s83 = sphi 0, %s81
    %s84 = sphi 0, %s83
    %s98 = sphi 0, %s84
    %s106 = sphi 0, %s108
    %s109 = sphi 0, %s106
    %s110 = sphi 0, %s109
    %s126 = sphi 0, %s110
  $region4: #{upsample_conv_pallas.1} parent=0 // loop_header_branch
    %12 = sbr.rel (%p10) target = $region8
  $region5: #{upsample_conv_pallas.1} parent=0 // loop_body
    %s14 = ssub.s32 %s9, 1
    %s15 = ssub.s32 %s9, 2
    %s22 = sadd.s32 1, %s17
    %p23 = scmp.ge.s32.totalorder %s22, 4
    %s24 = scalar_select %p23, 0, %s22
    %s25 = sadd.s32 1, %s16
    %s26 = scalar_select %p23, %s25, %s16
    %p27 = scmp.ge.s32.totalorder %s26, 2
    %s28 = scalar_select %p27, 0, %s26
    %s29 = ssub.s32 %s16, %s28
    %p30 = scmp.eq.s32.totalorder %s29, 0
    %s32 = sadd.s32 %s31, 1
    %s33 = scalar_select %p30, %s31, %s32
    %p36 = pneg %p30
    %p37 = scmp.eq.s32.totalorder %s9, 7
    %p38 = por %p36, %p37
    %p39 = scmp.ne.s32.totalorder %s31, %s34
    %p40 = scmp.eq.s32.totalorder %s9, 0
    %p41 = por %p39, %p40
    %p42 = scmp.ne.s32.totalorder %s31, %s34
    %p43 = scmp.eq.s32.totalorder %s14, 7
    %p44 = por %p42, %p43
    %p45 = scmp.ne.s32.totalorder %s34, %s35
    %p46 = scmp.eq.s32.totalorder %s14, 0
    %p47 = por %p45, %p46
    %p48 = scmp.ne.s32.totalorder %s34, %s35
    %p49 = scmp.eq.s32.totalorder %s15, 7
    %p50 = por %p48, %p49
    %p52 = scmp.ne.s32.totalorder %s35, %s51
    %p53 = scmp.eq.s32.totalorder %s15, 0
    %p54 = por %p52, %p53
    %s55 = ssub.s32 %s17, %s24
    %p56 = scmp.eq.s32.totalorder %s55, 0
    %s58 = sadd.s32 %s57, 1
    %s59 = scalar_select %p56, %s57, %s58
    %p62 = pneg %p56
    %p63 = scmp.eq.s32.totalorder %s9, 7
    %p64 = por %p62, %p63
    %p65 = scmp.ne.s32.totalorder %s57, %s60
    %p66 = scmp.eq.s32.totalorder %s9, 0
    %p67 = por %p65, %p66
    %p68 = scmp.ne.s32.totalorder %s57, %s60
    %p69 = scmp.eq.s32.totalorder %s14, 7
    %p70 = por %p68, %p69
    %p71 = scmp.ne.s32.totalorder %s60, %s61
    %p72 = scmp.eq.s32.totalorder %s14, 0
    %p73 = por %p71, %p72
    %p74 = scmp.ne.s32.totalorder %s60, %s61
    %p75 = scmp.eq.s32.totalorder %s15, 7
    %p76 = por %p74, %p75
    %p78 = scmp.ne.s32.totalorder %s61, %s77
    %p79 = scmp.eq.s32.totalorder %s15, 0
    %p80 = por %p78, %p79
    %s82 = sadd.s32 %s81, 1
    %p85 = scmp.eq.s32.totalorder %s9, 7
    %p86 = scmp.ne.s32.totalorder %s81, %s83
    %p87 = scmp.eq.s32.totalorder %s9, 0
    %p88 = por %p86, %p87
    %p89 = scmp.ne.s32.totalorder %s81, %s83
    %p90 = scmp.eq.s32.totalorder %s14, 7
    %p91 = por %p89, %p90
    %p92 = scmp.ne.s32.totalorder %s83, %s84
    %p93 = scmp.eq.s32.totalorder %s14, 0
    %p94 = por %p92, %p93
    %p95 = scmp.ne.s32.totalorder %s83, %s84
    %p96 = scmp.eq.s32.totalorder %s15, 7
    %p97 = por %p95, %p96
    %p99 = scmp.ne.s32.totalorder %s84, %s98
    %p100 = scmp.eq.s32.totalorder %s15, 0
    %p101 = por %p99, %p100
    %s102 = ssub.s32 %s16, %s28
    %s103 = ssub.s32 %s17, %s24
    %s104 = sor.u32 %s102, %s103
    %p105 = scmp.eq.s32.totalorder %s104, 0
    %s107 = sadd.s32 %s106, 1
    %s108 = scalar_select %p105, %s106, %s107
    %p111 = pneg %p105
    %p112 = scmp.eq.s32.totalorder %s9, 7
    %p113 = por %p111, %p112
    %p114 = scmp.ne.s32.totalorder %s106, %s109
    %p115 = scmp.eq.s32.totalorder %s9, 0
    %p116 = por %p114, %p115
    %p117 = scmp.ne.s32.totalorder %s106, %s109
    %p118 = scmp.eq.s32.totalorder %s14, 7
    %p119 = por %p117, %p118
    %p120 = scmp.ne.s32.totalorder %s109, %s110
    %p121 = scmp.eq.s32.totalorder %s14, 0
    %p122 = por %p120, %p121
    %p123 = scmp.ne.s32.totalorder %s109, %s110
    %p124 = scmp.eq.s32.totalorder %s15, 7
    %p125 = por %p123, %p124
    %p127 = scmp.ne.s32.totalorder %s110, %s126
    %p128 = scmp.eq.s32.totalorder %s15, 0
    %p129 = por %p127, %p128
    %p130 = scmp.le.s32.totalorder 1, %s9
    %p131 = scmp.lt.s32.totalorder %s9, 9
    %p132 = pnand %p130, %p131
    %p133 = pneg %p132
    // Predicated region
    $region9: #{upsample_conv_pallas.1} parent=5 // pred_check
      _
    $region10: #{upsample_conv_pallas.1} parent=5 // pred_check_branch
      %135 = sbr.rel (%p132) target = $region12
    $region11: #{upsample_conv_pallas.1} parent=5 // pred_region
      %s136 = ssub.s32 %s9, 1
      // Predicated region
      $region13: #{upsample_conv_pallas.1} parent=11 // pred_check
        %p137 = pneg %p94
      $region14: #{upsample_conv_pallas.1} parent=11 // pred_check_branch
        %139 = sbr.rel (%p137) target = $region16
      $region15: #{upsample_conv_pallas.1} parent=11 // pred_region
        _
      $region16: #{upsample_conv_pallas.1} parent=11 // pred_fallthru
        _
    $region12: #{upsample_conv_pallas.1} parent=5 // pred_fallthru
      _
    %p140 = scmp.lt.s32.totalorder %s9, 8
    // Predicated region
    $region17: #{upsample_conv_pallas.1} parent=5 // pred_check
      %p141 = pneg %p140
    $region18: #{upsample_conv_pallas.1} parent=5 // pred_check_branch
      %143 = sbr.rel (%p141) target = $region20
    $region19: #{upsample_conv_pallas.1} parent=5 // pred_region
      // Predicated region
      $region21: #{upsample_conv_pallas.1} parent=19 // pred_check
        %p144 = pneg %p41
      $region22: #{upsample_conv_pallas.1} parent=19 // pred_check_branch
        %146 = sbr.rel (%p144) target = $region24
      $region23: #{upsample_conv_pallas.1} parent=19 // pred_region
        %p147 = scmp.lt.s32.totalorder %s16, 1
        %s148 = scalar_select %p147, %s16, 1
        %s149 = smul.addr %s148, 3
        %s150 = smul.addr %s149, 4
        %s151 = scalar_lea.vmem %s0, %s150
      $region24: #{upsample_conv_pallas.1} parent=19 // pred_fallthru
        _
      // Predicated region
      $region25: #{upsample_conv_pallas.1} parent=19 // pred_check
        %p152 = pneg %p67
      $region26: #{upsample_conv_pallas.1} parent=19 // pred_check_branch
        %154 = sbr.rel (%p152) target = $region28
      $region27: #{upsample_conv_pallas.1} parent=19 // pred_region
        %p155 = scmp.lt.s32.totalorder %s17, 3
        %s156 = scalar_select %p155, %s17, 3
        %s157 = smul.addr %s156, 4
        %s158 = smul.addr %s157, 8
        %s159 = scalar_lea.vmem %s1, %s158
      $region28: #{upsample_conv_pallas.1} parent=19 // pred_fallthru
        _
    $region20: #{upsample_conv_pallas.1} parent=5 // pred_fallthru
      _
    %p160 = scmp.le.s32.totalorder 1, %s9
    %p161 = scmp.lt.s32.totalorder %s9, 9
    %p162 = pnand %p160, %p161
    %p163 = pneg %p162
    // Predicated region
    $region29: #{upsample_conv_pallas.1} parent=5 // pred_check
      _
    $region30: #{upsample_conv_pallas.1} parent=5 // pred_check_branch
      %165 = sbr.rel (%p162) target = $region32
    $region31: #{upsample_conv_pallas.1} parent=5 // pred_region
      %s166 = ssub.s32 %s9, 1
      %p167 = scmp.lt.s32.totalorder %s18, 1
      %s168 = scalar_select %p167, %s18, 1
      %s169 = smul.addr %s168, 3
      %s170 = smul.addr %s169, 4
      %s171 = scalar_lea.vmem %s0, %s170
      %p172 = pneg %p47
      %p173 = pneg %p44
      %p174 = scmp.lt.s32.totalorder %s19, 3
      %s175 = scalar_select %p174, %s19, 3
      %s176 = smul.addr %s175, 4
      %s177 = smul.addr %s176, 8
      %s178 = scalar_lea.vmem %s1, %s177
      %p179 = pneg %p73
      %p180 = pneg %p70
      %p181 = pneg %p94
      %p182 = pneg %p91
      %p183 = pneg %p122
      %p184 = pneg %p119
      %p185 = scmp.lt.s32.totalorder %s18, 1
      %s186 = scalar_select %p185, %s18, 1
      %p187 = scmp.lt.s32.totalorder %s19, 3
      %s188 = scalar_select %p187, %s19, 3
      %s189 = smul.addr %s188, 3
      %s190 = smul.addr %s186, 12
      %s191 = sadd.s32 %s189, %s190
      %s192 = smul.addr %s191, 8
      %s193 = scalar_lea.vmem %s3, %s192
      %p194 = scmp.lt.s32.totalorder %s18, 1
      %s195 = scalar_select %p194, %s18, 1
      %s196 = smul.addr %s195, 3
      %s197 = smul.addr %s196, 4
      %s198 = scalar_lea.vmem %s0, %s197
      %p199 = scmp.lt.s32.totalorder %s19, 3
      %s200 = scalar_select %p199, %s19, 3
      %s201 = smul.addr %s200, 4
      %s202 = smul.addr %s201, 8
      %s203 = scalar_lea.vmem %s1, %s202
      %p204 = scmp.lt.s32.totalorder %s18, 1
      %s205 = scalar_select %p204, %s18, 1
      %p206 = scmp.lt.s32.totalorder %s19, 3
      %s207 = scalar_select %p206, %s19, 3
      %s208 = smul.addr %s207, 3
      %s209 = smul.addr %s205, 12
      %s210 = sadd.s32 %s208, %s209
      %s211 = smul.addr %s210, 8
      %s212 = scalar_lea.vmem %s3, %s211
      %v213 = vld [vmem:[%s198] sm:$0xff]
      %v214 = vld [vmem:[%s198 + $0x8] sm:$0xf]
      %v215 = vld [vmem:[%s203] sm:$0xff]
      %s216 = scalar_lea.vmem %s203, 8
      %v217 = vld [vmem:[%s216] sm:$0xff]
      %220 = vst [vmem:[#allocation1] ss:$2 sm:$0xff] %v213
      %s221 = scalar_lea.vmem [#allocation1], 16
      %222 = vst [vmem:[%s221] ss:$2 sm:$0xff] %v214
      %v223 = vld.sshfl [vmem:[#allocation1] sm:$0xff pattern:$0x75316420]
      %v224 = vld.sshfl [vmem:[#allocation1 + $0x8] sm:$0xff pattern:$0x75316420]
      %v225 = vld.sshfl [vmem:[#allocation1 + $0x10] sm:$0xff pattern:$0x75316420]
      %226 = vrot.lane.b32.xlu0 %v223, 127
      %v227 = vpop.permute.xlu0 %226
      %228 = vrot.lane.b32.xlu0 %v224, 127
      %v229 = vpop.permute.xlu0 %228
      %230 = vrot.lane.b32.xlu0 %v225, 127
      %v231 = vpop.permute.xlu0 %230
      %vm232 = vcmask 1039360
      %v233 = vsel %vm232, %v227, %v229
      %v234 = vsel %vm232, %v229, %v231
      %vm235 = vcmask 31744
      %v237 = vsel %vm235, %v217, 0
      %vm239 = vcmask 1043456
      %v240 = vsel %vm239, %v233, 0
      %v242 = vsel %vm239, %v234, 0
      %v244 = vsel %vm239, %v231, 0
      %246 = vmatpush.msra.mxu0 0.0
      %247 = vmatpush.msra.mxu0 0.0
      %248 = vmatpush.msra.mxu0 0.0
      %249 = vmatpush.msra.mxu0 0.0
      %250 = vmatpush.msra.mxu0 0.0
      %251 = vmatpush.msra.mxu0 0.0
      %252 = vmatpush.msra.mxu0 0.0
      %253 = vmatpush.msra.mxu0 0.0
      %254 = vmatpush.msra.mxu0 0.0
      %255 = vmatpush.msra.mxu0 0.0
      %256 = vmatpush.msra.mxu0 0.0
      %257 = vmatpush.msra.mxu0 0.0
      %258 = vmatpush.msra.mxu0 0.0
      %259 = vmatpush.msra.mxu0 0.0
      %260 = vmatpush.msra.mxu0 0.0
      %261 = vmatpush.msra.mxu0 %v240
      %262 = vmatmul.f32.gmra.mxu0 %v237
      %v263 = vpop.f32.mrf.mxu0
      %v264 = vadd.f32 0.0, %v263
      %265 = vdwg.mxu0
      %266 = vmatpush.msra.mxu0 0.0
      %267 = vmatpush.msra.mxu0 0.0
      %268 = vmatpush.msra.mxu0 0.0
      %269 = vmatpush.msra.mxu0 0.0
      %270 = vmatpush.msra.mxu0 0.0
      %271 = vmatpush.msra.mxu0 0.0
      %272 = vmatpush.msra.mxu0 0.0
      %273 = vmatpush.msra.mxu0 0.0
      %274 = vmatpush.msra.mxu0 0.0
      %275 = vmatpush.msra.mxu0 0.0
      %276 = vmatpush.msra.mxu0 0.0
      %277 = vmatpush.msra.mxu0 0.0
      %278 = vmatpush.msra.mxu0 0.0
      %279 = vmatpush.msra.mxu0 0.0
      %280 = vmatpush.msra.mxu0 0.0
      %281 = vmatpush.msra.mxu0 %v242
      %282 = vmatmul.f32.gmra.mxu0 %v237
      %v283 = vpop.f32.mrf.mxu0
      %v284 = vadd.f32 0.0, %v283
      %285 = vdwg.mxu0
      %286 = vmatpush.msra.mxu0 0.0
      %287 = vmatpush.msra.mxu0 0.0
      %288 = vmatpush.msra.mxu0 0.0
      %289 = vmatpush.msra.mxu0 0.0
      %290 = vmatpush.msra.mxu0 0.0
      %291 = vmatpush.msra.mxu0 0.0
      %292 = vmatpush.msra.mxu0 0.0
      %293 = vmatpush.msra.mxu0 0.0
      %294 = vmatpush.msra.mxu0 0.0
      %295 = vmatpush.msra.mxu0 0.0
      %296 = vmatpush.msra.mxu0 0.0
      %297 = vmatpush.msra.mxu0 0.0
      %298 = vmatpush.msra.mxu0 0.0
      %299 = vmatpush.msra.mxu0 0.0
      %300 = vmatpush.msra.mxu0 0.0
      %301 = vmatpush.msra.mxu0 %v244
      %302 = vmatmul.f32.gmra.mxu0 %v237
      %v303 = vpop.f32.mrf.mxu0
      %v304 = vadd.f32 0.0, %v303
      %305 = vdwg.mxu0
      %306 = vst [vmem:[#allocation1] ss:$2 sm:$0xff] %v213
      %s307 = scalar_lea.vmem [#allocation1], 16
      %308 = vst [vmem:[%s307] ss:$2 sm:$0xff] %v214
      %v309 = vld.sshfl [vmem:[#allocation1] sm:$0xff pattern:$0x75316420]
      %v310 = vld.sshfl [vmem:[#allocation1 + $0x8] sm:$0xff pattern:$0x75316420]
      %v311 = vld.sshfl [vmem:[#allocation1 + $0x10] sm:$0xff pattern:$0x75316420]
      %v313 = vsel %vm235, %v215, 0
      %v315 = vsel %vm239, %v309, 0
      %v317 = vsel %vm239, %v310, 0
      %v319 = vsel %vm239, %v311, 0
      %321 = vmatpush.msra.mxu0 0.0
      %322 = vmatpush.msra.mxu0 0.0
      %323 = vmatpush.msra.mxu0 0.0
      %324 = vmatpush.msra.mxu0 0.0
      %325 = vmatpush.msra.mxu0 0.0
      %326 = vmatpush.msra.mxu0 0.0
      %327 = vmatpush.msra.mxu0 0.0
      %328 = vmatpush.msra.mxu0 0.0
      %329 = vmatpush.msra.mxu0 0.0
      %330 = vmatpush.msra.mxu0 0.0
      %331 = vmatpush.msra.mxu0 0.0
      %332 = vmatpush.msra.mxu0 0.0
      %333 = vmatpush.msra.mxu0 0.0
      %334 = vmatpush.msra.mxu0 0.0
      %335 = vmatpush.msra.mxu0 0.0
      %336 = vmatpush.msra.mxu0 %v315
      %337 = vmatmul.f32.gmra.mxu0 %v313
      %v338 = vpop.f32.mrf.mxu0
      %v339 = vadd.f32 %v264, %v338
      %340 = vdwg.mxu0
      %341 = vmatpush.msra.mxu0 0.0
      %342 = vmatpush.msra.mxu0 0.0
      %343 = vmatpush.msra.mxu0 0.0
      %344 = vmatpush.msra.mxu0 0.0
      %345 = vmatpush.msra.mxu0 0.0
      %346 = vmatpush.msra.mxu0 0.0
      %347 = vmatpush.msra.mxu0 0.0
      %348 = vmatpush.msra.mxu0 0.0
      %349 = vmatpush.msra.mxu0 0.0
      %350 = vmatpush.msra.mxu0 0.0
      %351 = vmatpush.msra.mxu0 0.0
      %352 = vmatpush.msra.mxu0 0.0
      %353 = vmatpush.msra.mxu0 0.0
      %354 = vmatpush.msra.mxu0 0.0
      %355 = vmatpush.msra.mxu0 0.0
      %356 = vmatpush.msra.mxu0 %v317
      %357 = vmatmul.f32.gmra.mxu0 %v313
      %v358 = vpop.f32.mrf.mxu0
      %v359 = vadd.f32 %v284, %v358
      %360 = vdwg.mxu0
      %361 = vmatpush.msra.mxu0 0.0
      %362 = vmatpush.msra.mxu0 0.0
      %363 = vmatpush.msra.mxu0 0.0
      %364 = vmatpush.msra.mxu0 0.0
      %365 = vmatpush.msra.mxu0 0.0
      %366 = vmatpush.msra.mxu0 0.0
      %367 = vmatpush.msra.mxu0 0.0
      %368 = vmatpush.msra.mxu0 0.0
      %369 = vmatpush.msra.mxu0 0.0
      %370 = vmatpush.msra.mxu0 0.0
      %371 = vmatpush.msra.mxu0 0.0
      %372 = vmatpush.msra.mxu0 0.0
      %373 = vmatpush.msra.mxu0 0.0
      %374 = vmatpush.msra.mxu0 0.0
      %375 = vmatpush.msra.mxu0 0.0
      %376 = vmatpush.msra.mxu0 %v319
      %377 = vmatmul.f32.gmra.mxu0 %v313
      %v378 = vpop.f32.mrf.mxu0
      %v379 = vadd.f32 %v304, %v378
      %380 = vdwg.mxu0
      %s381 = scalar_lea.vmem %s203, 16
      %v382 = vld [vmem:[%s381] sm:$0xff]
      %383 = vst [vmem:[#allocation1] ss:$2 sm:$0xff] %v213
      %s384 = scalar_lea.vmem [#allocation1], 16
      %385 = vst [vmem:[%s384] ss:$2 sm:$0xff] %v214
      %v386 = vld.sshfl [vmem:[#allocation1] sm:$0xff pattern:$0x75316420]
      %v387 = vld.sshfl [vmem:[#allocation1 + $0x8] sm:$0xff pattern:$0x75316420]
      %v388 = vld.sshfl [vmem:[#allocation1 + $0x10] sm:$0xff pattern:$0x75316420]
      %389 = vrot.lane.b32.xlu0 %v386, 110
      %v390 = vpop.permute.xlu0 %389
      %391 = vrot.lane.b32.xlu0 %v387, 110
      %v392 = vpop.permute.xlu0 %391
      %393 = vrot.lane.b32.xlu0 %v388, 110
      %v394 = vpop.permute.xlu0 %393
      %vm395 = vcmask 900096
      %v396 = vsel %vm395, %v390, %v392
      %v397 = vsel %vm395, %v392, %v394
      %v399 = vsel %vm235, %v382, 0
      %v401 = vsel %vm239, %v396, 0
      %v403 = vsel %vm239, %v397, 0
      %v405 = vsel %vm239, %v394, 0
      %407 = vmatpush.msra.mxu0 0.0
      %408 = vmatpush.msra.mxu0 0.0
      %409 = vmatpush.msra.mxu0 0.0
      %410 = vmatpush.msra.mxu0 0.0
      %411 = vmatpush.msra.mxu0 0.0
      %412 = vmatpush.msra.mxu0 0.0
      %413 = vmatpush.msra.mxu0 0.0
      %414 = vmatpush.msra.mxu0 0.0
      %415 = vmatpush.msra.mxu0 0.0
      %416 = vmatpush.msra.mxu0 0.0
      %417 = vmatpush.msra.mxu0 0.0
      %418 = vmatpush.msra.mxu0 0.0
      %419 = vmatpush.msra.mxu0 0.0
      %420 = vmatpush.msra.mxu0 0.0
      %421 = vmatpush.msra.mxu0 0.0
      %422 = vmatpush.msra.mxu0 %v401
      %423 = vmatmul.f32.gmra.mxu0 %v399
      %v424 = vpop.f32.mrf.mxu0
      %v425 = vadd.f32 0.0, %v424
      %426 = vdwg.mxu0
      %427 = vmatpush.msra.mxu0 0.0
      %428 = vmatpush.msra.mxu0 0.0
      %429 = vmatpush.msra.mxu0 0.0
      %430 = vmatpush.msra.mxu0 0.0
      %431 = vmatpush.msra.mxu0 0.0
      %432 = vmatpush.msra.mxu0 0.0
      %433 = vmatpush.msra.mxu0 0.0
      %434 = vmatpush.msra.mxu0 0.0
      %435 = vmatpush.msra.mxu0 0.0
      %436 = vmatpush.msra.mxu0 0.0
      %437 = vmatpush.msra.mxu0 0.0
      %438 = vmatpush.msra.mxu0 0.0
      %439 = vmatpush.msra.mxu0 0.0
      %440 = vmatpush.msra.mxu0 0.0
      %441 = vmatpush.msra.mxu0 0.0
      %442 = vmatpush.msra.mxu0 %v403
      %443 = vmatmul.f32.gmra.mxu0 %v399
      %v444 = vpop.f32.mrf.mxu0
      %v445 = vadd.f32 0.0, %v444
      %446 = vdwg.mxu0
      %447 = vmatpush.msra.mxu0 0.0
      %448 = vmatpush.msra.mxu0 0.0
      %449 = vmatpush.msra.mxu0 0.0
      %450 = vmatpush.msra.mxu0 0.0
      %451 = vmatpush.msra.mxu0 0.0
      %452 = vmatpush.msra.mxu0 0.0
      %453 = vmatpush.msra.mxu0 0.0
      %454 = vmatpush.msra.mxu0 0.0
      %455 = vmatpush.msra.mxu0 0.0
      %456 = vmatpush.msra.mxu0 0.0
      %457 = vmatpush.msra.mxu0 0.0
      %458 = vmatpush.msra.mxu0 0.0
      %459 = vmatpush.msra.mxu0 0.0
      %460 = vmatpush.msra.mxu0 0.0
      %461 = vmatpush.msra.mxu0 0.0
      %462 = vmatpush.msra.mxu0 %v405
      %463 = vmatmul.f32.gmra.mxu0 %v399
      %v464 = vpop.f32.mrf.mxu0
      %v465 = vadd.f32 0.0, %v464
      %466 = vdwg.mxu0
      %v467 = vadd.f32 %v339, %v425
      %v468 = vadd.f32 %v359, %v445
      %v469 = vadd.f32 %v379, %v465
      %s470 = scalar_lea.vmem %s203, 24
      %v471 = vld [vmem:[%s470] sm:$0xff]
      %472 = vst [vmem:[#allocation1] ss:$2 sm:$0xff] %v213
      %s473 = scalar_lea.vmem [#allocation1], 16
      %474 = vst [vmem:[%s473] ss:$2 sm:$0xff] %v214
      %v475 = vld.sshfl [vmem:[#allocation1] sm:$0xff pattern:$0x75316420]
      %v476 = vld.sshfl [vmem:[#allocation1 + $0x8] sm:$0xff pattern:$0x75316420]
      %v477 = vld.sshfl [vmem:[#allocation1 + $0x10] sm:$0xff pattern:$0x75316420]
      %478 = vrot.lane.b32.xlu0 %v475, 109
      %v479 = vpop.permute.xlu0 %478
      %480 = vrot.lane.b32.xlu0 %v476, 109
      %v481 = vpop.permute.xlu0 %480
      %482 = vrot.lane.b32.xlu0 %v477, 109
      %v483 = vpop.permute.xlu0 %482
      %vm484 = vcmask 891904
      %v485 = vsel %vm484, %v479, %v481
      %v486 = vsel %vm484, %v481, %v483
      %v488 = vsel %vm235, %v471, 0
      %v490 = vsel %vm239, %v485, 0
      %v492 = vsel %vm239, %v486, 0
      %v494 = vsel %vm239, %v483, 0
      %496 = vmatpush.msra.mxu0 0.0
      %497 = vmatpush.msra.mxu0 0.0
      %498 = vmatpush.msra.mxu0 0.0
      %499 = vmatpush.msra.mxu0 0.0
      %500 = vmatpush.msra.mxu0 0.0
      %501 = vmatpush.msra.mxu0 0.0
      %502 = vmatpush.msra.mxu0 0.0
      %503 = vmatpush.msra.mxu0 0.0
      %504 = vmatpush.msra.mxu0 0.0
      %505 = vmatpush.msra.mxu0 0.0
      %506 = vmatpush.msra.mxu0 0.0
      %507 = vmatpush.msra.mxu0 0.0
      %508 = vmatpush.msra.mxu0 0.0
      %509 = vmatpush.msra.mxu0 0.0
      %510 = vmatpush.msra.mxu0 0.0
      %511 = vmatpush.msra.mxu0 %v490
      %512 = vmatmul.f32.gmra.mxu0 %v488
      %v513 = vpop.f32.mrf.mxu0
      %v514 = vadd.f32 0.0, %v513
      %515 = vdwg.mxu0
      %516 = vmatpush.msra.mxu0 0.0
      %517 = vmatpush.msra.mxu0 0.0
      %518 = vmatpush.msra.mxu0 0.0
      %519 = vmatpush.msra.mxu0 0.0
      %520 = vmatpush.msra.mxu0 0.0
      %521 = vmatpush.msra.mxu0 0.0
      %522 = vmatpush.msra.mxu0 0.0
      %523 = vmatpush.msra.mxu0 0.0
      %524 = vmatpush.msra.mxu0 0.0
      %525 = vmatpush.msra.mxu0 0.0
      %526 = vmatpush.msra.mxu0 0.0
      %527 = vmatpush.msra.mxu0 0.0
      %528 = vmatpush.msra.mxu0 0.0
      %529 = vmatpush.msra.mxu0 0.0
      %530 = vmatpush.msra.mxu0 0.0
      %531 = vmatpush.msra.mxu0 %v492
      %532 = vmatmul.f32.gmra.mxu0 %v488
      %v533 = vpop.f32.mrf.mxu0
      %v534 = vadd.f32 0.0, %v533
      %535 = vdwg.mxu0
      %536 = vmatpush.msra.mxu0 0.0
      %537 = vmatpush.msra.mxu0 0.0
      %538 = vmatpush.msra.mxu0 0.0
      %539 = vmatpush.msra.mxu0 0.0
      %540 = vmatpush.msra.mxu0 0.0
      %541 = vmatpush.msra.mxu0 0.0
      %542 = vmatpush.msra.mxu0 0.0
      %543 = vmatpush.msra.mxu0 0.0
      %544 = vmatpush.msra.mxu0 0.0
      %545 = vmatpush.msra.mxu0 0.0
      %546 = vmatpush.msra.mxu0 0.0
      %547 = vmatpush.msra.mxu0 0.0
      %548 = vmatpush.msra.mxu0 0.0
      %549 = vmatpush.msra.mxu0 0.0
      %550 = vmatpush.msra.mxu0 0.0
      %551 = vmatpush.msra.mxu0 %v494
      %552 = vmatmul.f32.gmra.mxu0 %v488
      %v553 = vpop.f32.mrf.mxu0
      %v554 = vadd.f32 0.0, %v553
      %555 = vdwg.mxu0
      %v556 = vadd.f32 %v467, %v514
      %v557 = vadd.f32 %v468, %v534
      %v558 = vadd.f32 %v469, %v554
      %v559 = vld [vmem:[%s2] sm:$0xff]
      %561 = vset.pattern.permute.xlu0 0
      %562 = vperm.xlu0 %561, %v559
      %v563 = vpop.permute.xlu0 %562
      %v565 = vadd.f32 %v556, %v563
      %v566 = vadd.f32 %v557, %v563
      %v567 = vadd.f32 %v558, %v563
      %568 = vst [vmem:[%s212] sm:$0xff] %v565
      %569 = vst [vmem:[%s212 + $0x8] sm:$0xff] %v566
      %vm570 = vcmask 261120
      %571 = vst.msk [vmem:[%s212 + $0x10] sm:$0xff] %vm570, %v567
      %p572 = scmp.lt.s32.totalorder %s18, 1
      %s573 = scalar_select %p572, %s18, 1
      %p574 = scmp.lt.s32.totalorder %s19, 3
      %s575 = scalar_select %p574, %s19, 3
      %s576 = smul.addr %s575, 3
      %s577 = smul.addr %s573, 12
      %s578 = sadd.s32 %s576, %s577
      %s579 = smul.addr %s578, 8
      %s580 = scalar_lea.vmem %s3, %s579
      // Predicated region
      $region33: #{upsample_conv_pallas.1} parent=31 // pred_check
        %p581 = pneg %p119
      $region34: #{upsample_conv_pallas.1} parent=31 // pred_check_branch
        %583 = sbr.rel (%p581) target = $region36
      $region35: #{upsample_conv_pallas.1} parent=31 // pred_region
        _
      $region36: #{upsample_conv_pallas.1} parent=31 // pred_fallthru
        _
    $region32: #{upsample_conv_pallas.1} parent=5 // pred_fallthru
      _
    %p584 = scmp.le.s32.totalorder 2, %s9
    // Predicated region
    $region37: #{upsample_conv_pallas.1} parent=5 // pred_check
      %p585 = pneg %p584
    $region38: #{upsample_conv_pallas.1} parent=5 // pred_check_branch
      %587 = sbr.rel (%p585) target = $region40
    $region39: #{upsample_conv_pallas.1} parent=5 // pred_region
      %s588 = ssub.s32 %s9, 2
      // Predicated region
      $region41: #{upsample_conv_pallas.1} parent=39 // pred_check
        %p589 = pneg %p125
      $region42: #{upsample_conv_pallas.1} parent=39 // pred_check_branch
        %591 = sbr.rel (%p589) target = $region44
      $region43: #{upsample_conv_pallas.1} parent=39 // pred_region
        %p592 = scmp.lt.s32.totalorder %s20, 1
        %s593 = scalar_select %p592, %s20, 1
        %p594 = scmp.lt.s32.totalorder %s21, 3
        %s595 = scalar_select %p594, %s21, 3
        %s596 = smul.addr %s595, 3
        %s597 = smul.addr %s593, 12
        %s598 = sadd.s32 %s596, %s597
        %s599 = smul.addr %s598, 8
        %s600 = scalar_lea.vmem %s3, %s599
      $region44: #{upsample_conv_pallas.1} parent=39 // pred_fallthru
        _
    $region40: #{upsample_conv_pallas.1} parent=5 // pred_fallthru
      _
  $region6: #{upsample_conv_pallas.1} parent=0 // loop_footer
    %s13 = sadd.s32 1, %s9
  $region7: #{upsample_conv_pallas.1} parent=0 // loop_footer_branch
    %8 = sbr.rel target = $region3
  $region8: #{upsample_conv_pallas.1} parent=0 // loop_exit
    _

</llo_original>
